<compile_context>
chip_gen: v5e
topology: v5e:2x2
jax: 0.10.0
libtpu: 0.0.40
codegen_flags: <defaults>
</compile_context>

<pallas_src>
import jax
import jax.numpy as jnp
from jax.experimental import pallas as pl
from jax.experimental.pallas import tpu as pltpu


_LANE = 128
_MAX_COL_ELEMS = 64 * 1024              # cap column tile (<=256 KiB f32) so rows fit
_TARGET_BLOCK_BYTES = 4 * 1024 * 1024   # ~4 MiB blocks: past the HBM-roofline knee
_VMEM_HEADROOM = 4 * 1024 * 1024        # slack for Mosaic internal scratch
_DEFAULT_VMEM_LIMIT = 32 * 1024 * 1024  # default scoped limit on v6e/v7x


def _add_pe_kernel(x_ref, pe_ref, o_ref):
    # x_ref / o_ref : (tb, td) lane-dense blocks of the flattened (B, T*C) input
    # pe_ref        : (1,  td) positional-encoding slab (sublane-broadcast add)
    o_ref[...] = x_ref[...] + pe_ref[...]
    # TODO(synk): training-mode dropout (stochastic mask via pltpu.prng_* and
    # 1/(1-p) scaling) not implemented; this matches nn.Dropout in eval().


def make_sinusoidal_embedding(input_dim: int, max_len: int) -> jnp.ndarray:
    """Deterministic parameter setup, identical to the PyTorch __init__."""
    idx = 1.0 / 10000.0 ** (jnp.arange(0, input_dim, 2, dtype=jnp.float32) / input_dim)
    pos = jnp.arange(0, max_len, dtype=jnp.float32).reshape(max_len, 1)
    emb = jnp.zeros((max_len, input_dim), dtype=jnp.float32)
    emb = emb.at[:, 0::2].set(jnp.sin(pos * idx))
    # Guard odd input_dim: cos table has ceil(C/2) cols but only floor(C/2) slots.
    emb = emb.at[:, 1::2].set(jnp.cos(pos * idx)[:, : input_dim // 2])
    return emb


def _sublane_pack(dtype) -> int:
    """Dtype-native sublane packing: rows per vreg sublane group."""
    itemsize = jnp.dtype(dtype).itemsize
    if itemsize >= 4:
        return 8
    if itemsize == 2:
        return 16
    return 32


def _vmem_budget_bytes() -> int:
    """Scoped-VMEM budget for the kernel's working set (generation-aware)."""
    try:
        cap = int(pltpu.get_tpu_info().vmem_capacity_bytes)
    except Exception:
        cap = 64 * 1024 * 1024  # v7x lower bound; conservative on v5e/v6e
    return min(_DEFAULT_VMEM_LIMIT, cap // 2) - _VMEM_HEADROOM


def _choose_tiles(B: int, D: int, itemsize: int, sub: int, budget_bytes: int):
    """Pick (row_tile, col_tile) for the lane-padded flattened (B, D) view."""
    # Column tile: full row unless huge; D is already padded to a multiple of
    # 128 by the wrapper, so the capped tile stays lane-aligned.
    td = D if D <= _MAX_COL_ELEMS else _MAX_COL_ELEMS

    # Row tile: as many rows as fit the ~4 MiB target block.
    tb = max(1, _TARGET_BLOCK_BYTES // (td * itemsize))
    if tb < B:
        tb = max(sub, (tb // sub) * sub)  # dtype-native sublane rounding
    tb = min(tb, B)

    # Safety clamp: 2x-buffered input + 2x-buffered output blocks plus the
    # double-buffered PE slab must fit the scoped-VMEM budget (critical on
    # v7x where physical VMEM is only 64 MiB per TensorCore).
    def working_set(rows: int) -> int:
        return (4 * rows * td + 2 * td) * itemsize

    while tb > sub and tb < B and working_set(tb) > budget_bytes:
        tb = max(sub, ((tb // 2) // sub) * sub)
    while tb == B and tb > 1 and working_set(tb) > budget_bytes:
        # Full-batch block too big: fall back to sublane-aligned row tiles.
        tb = max(1, min(B - 1, ((tb // 2) // sub) * sub)) or 1
        if tb < B and tb > sub:
            continue
        break
    return tb, td


def positional_encoding(x: jnp.ndarray, embedding: jnp.ndarray,
                        *, donate_x: bool = False) -> jnp.ndarray:
    """x: (B, T, C); embedding: (max_len, C). Returns (B, T, C)."""
    B, T, C = x.shape
    D = T * C
    dtype = x.dtype
    itemsize = jnp.dtype(dtype).itemsize

    pe = embedding[:T, :].astype(dtype).reshape(1, D)   # lane-dense PE slab
    x2 = x.reshape(B, D)                                 # lane-dense input view

    # Lane-pad the flattened row to a multiple of 128 so stores are unmasked
    # full-vreg vst (and the 64K column cap is always lane-aligned).
    Dp = ((D + _LANE - 1) // _LANE) * _LANE
    if Dp != D:
        x2 = jnp.pad(x2, ((0, 0), (0, Dp - D)))
        pe = jnp.pad(pe, ((0, 0), (0, Dp - D)))

    sub = _sublane_pack(dtype)
    budget = _vmem_budget_bytes()
    tb, td = _choose_tiles(B, Dp, itemsize, sub, budget)

    n_col = pl.cdiv(Dp, td)
    n_row = pl.cdiv(B, tb)

    if n_col == 1:
        # Degenerate column axis (T*C <= 64K elems): lead with the batch-row
        # axis so the v7x megacore shards an axis with >1 step.
        grid = (n_row, n_col)
        x_spec = pl.BlockSpec((tb, td), lambda i, j: (i, j))
        pe_spec = pl.BlockSpec((1, td), lambda i, j: (0, j))
        o_spec = pl.BlockSpec((tb, td), lambda i, j: (i, j))
    else:
        # Column axis outer, row axis inner: PE block index constant across the
        # inner loop -> PE slab DMA'd once per column tile, stays resident.
        grid = (n_col, n_row)
        x_spec = pl.BlockSpec((tb, td), lambda j, i: (i, j))
        pe_spec = pl.BlockSpec((1, td), lambda j, i: (0, j))
        o_spec = pl.BlockSpec((tb, td), lambda j, i: (i, j))

    # Scoped-VMEM limit derived from the actual working set (never below the
    # v6e/v7x default of 32 MiB; lifts v5e's 16 MiB default).
    vmem_limit = int(max(_DEFAULT_VMEM_LIMIT,
                         (4 * tb * td + 2 * td) * itemsize + _VMEM_HEADROOM))

    out2 = pl.pallas_call(
        _add_pe_kernel,
        out_shape=jax.ShapeDtypeStruct((B, Dp), dtype),
        grid_spec=pltpu.PrefetchScalarGridSpec(
            num_scalar_prefetch=0,
            grid=grid,
            in_specs=[x_spec, pe_spec],
            out_specs=o_spec,
        ),
        compiler_params=pltpu.CompilerParams(
            dimension_semantics=("parallel", "parallel"),
            vmem_limit_bytes=vmem_limit,
        ),
        # Reuse x's HBM buffer for the output when the caller donates x.
        input_output_aliases=({0: 0} if donate_x else {}),
    )(x2, pe)

    if Dp != D:
        out2 = out2[:, :D]
    return out2.reshape(B, T, C)


if __name__ == "__main__":
    B, T, C = 2, 8, 32       # small shapes consistent with the (B, T, C) forward
    max_len = 64

    key = jax.random.PRNGKey(0)
    x = jax.random.normal(key, (B, T, C), dtype=jnp.float32)
    embedding = make_sinusoidal_embedding(input_dim=C, max_len=max_len)

    out = positional_encoding(x, embedding)
    out = jax.block_until_ready(out)

    # correctness check vs pure-JAX reference (dropout = identity in eval mode)
    ref = x + embedding[None, :T, :]
    assert out.shape == (B, T, C)
    assert jnp.allclose(out, ref, atol=1e-6), "mismatch vs reference"

    print("KERNEL_OK")
</pallas_src>

<mosaic_0001>
module attributes {stable_mosaic.version = 11 : i64} {
  func.func @_add_pe_kernel(%arg0: i32, %arg1: i32, %arg2: memref<2x256xf32, #tpu.memory_space<vmem>>, %arg3: memref<1x256xf32, #tpu.memory_space<vmem>>, %arg4: memref<2x256xf32, #tpu.memory_space<vmem>>) attributes {dimension_semantics = [#tpu.dimension_semantics<parallel>, #tpu.dimension_semantics<parallel>], iteration_bounds = array<i64: 1, 1>, scalar_prefetch = 0 : i64, scratch_operands = 0 : i64, tpu.core_type = #tpu.core_type<tc>, window_params = [{transform_indices = @transform_0, window_bounds = array<i64: 2, 256>}, {transform_indices = @transform_1, window_bounds = array<i64: 1, 256>}, {transform_indices = @transform_2, window_bounds = array<i64: 2, 256>}]} {
    %c0 = arith.constant 0 : index
    %c0_0 = arith.constant 0 : index
    %0 = vector.load %arg2[%c0, %c0_0] : memref<2x256xf32, #tpu.memory_space<vmem>>, vector<2x256xf32>
    %c0_1 = arith.constant 0 : index
    %c0_2 = arith.constant 0 : index
    %1 = vector.load %arg3[%c0_1, %c0_2] : memref<1x256xf32, #tpu.memory_space<vmem>>, vector<1x256xf32>
    %2 = vector.broadcast %1 : vector<1x256xf32> to vector<2x256xf32>
    %3 = arith.addf %0, %2 : vector<2x256xf32>
    %c0_3 = arith.constant 0 : index
    %c0_4 = arith.constant 0 : index
    %4 = vector.load %arg4[%c0_3, %c0_4] : memref<2x256xf32, #tpu.memory_space<vmem>>, vector<2x256xf32>
    tpu.vector_store %arg4[%c0_3, %c0_4], %3 {strides = array<i32>} : memref<2x256xf32, #tpu.memory_space<vmem>>, vector<2x256xf32>,
    return
  }
  func.func @transform_0(%arg0: i32, %arg1: i32) -> (i32, i32) {
    %c0_i32 = arith.constant 0 : i32
    return %arg0, %arg1 : i32, i32
  }
  func.func @transform_1(%arg0: i32, %arg1: i32) -> (i32, i32) {
    %c0_i32 = arith.constant 0 : i32
    %c0_i32_0 = arith.constant 0 : i32
    return %c0_i32, %arg1 : i32, i32
  }
  func.func @transform_2(%arg0: i32, %arg1: i32) -> (i32, i32) {
    %c0_i32 = arith.constant 0 : i32
    return %arg0, %arg1 : i32, i32
  }
}

</mosaic_0001>

<llo_original>
// kernel: tpu_custom_call.1
$region0: #{tpu_custom_call.1}
  #allocation0 [shape = 'u32[]', space=smem, size = 0x4, offset = 0x4, fixed_abs, tag = 'smem constant byte address 0x4 - core index']
  #allocation1 [shape = 'u32[72,128]{1,0:T(1,128)}', space=vmem, size = 0x9000, scoped, tag = 'internal scratch']
  %s0 = inlined_call_operand.hbm [shape: f32[2,256], index: 0, kind: input, shape index: {}]
  %s1 = inlined_call_operand.hbm [shape: f32[1,256], index: 1, kind: input, shape index: {}]
  %s2 = inlined_call_operand.hbm [shape: f32[2,256], index: 2, kind: output, shape index: {}]
  %s3 = sld [smem:[#allocation0]]
  $region26: #{tpu_custom_call.1} parent=0
    _
  %s5 = ssub.s32 1, %s3
  %s6 = scalar_select 0, %s5, %s3
  $region1: #{tpu_custom_call.1} parent=0
    #allocation2 [shape = 'u8[2048]{0}', space=vmem, size = 0x800, scoped, tag = 'input window, operand 0, single buffered']
    #allocation3 [shape = 's32[1]{0}', space=sflag, size = 0x4, scoped, tag = 'scoped memory for tpu_custom_call.1']
    #allocation4 [shape = 's32[1]{0}', space=sflag, size = 0x4, scoped, tag = 'scoped memory for tpu_custom_call.1']
    #allocation5 [shape = 'u8[1024]{0}', space=vmem, size = 0x400, scoped, tag = 'input window, operand 1, single buffered']
    #allocation6 [shape = 's32[1]{0}', space=sflag, size = 0x4, scoped, tag = 'scoped memory for tpu_custom_call.1']
    #allocation7 [shape = 'u8[2048]{0}', space=vmem, size = 0x800, scoped, tag = 'output window, operand 0, single buffered']
    %7 = vsyncpa [#allocation3], 0
    %8 = vsyncpa [#allocation6], 0
    %9 = vsyncpa [#allocation4], 0
    // Predicated region
    $region2: #{tpu_custom_call.1} parent=1 // pred_check
      _
    $region3: #{tpu_custom_call.1} parent=1 // pred_check_branch
      %11 = sbr.rel (0) target = $region5
    $region4: #{tpu_custom_call.1} parent=1 // pred_region
      %13 = vsyncadd [#allocation3], 0
      %s15 = sshll.u32 %s0, 4
      %s16 = int_to_ptr.hbm [resolvable:$true] %s15
      %s17 = sshll.u32 [#allocation2], 4
      %s18 = int_to_ptr.vmem [resolvable:$true] %s17
      %20 = dma.hbm_to_vmem [thread:$0]  %s16, 64, %s18, [#allocation3]
    $region5: #{tpu_custom_call.1} parent=1 // pred_fallthru
      _
    // Predicated region
    $region6: #{tpu_custom_call.1} parent=1 // pred_check
      _
    $region7: #{tpu_custom_call.1} parent=1 // pred_check_branch
      %22 = sbr.rel (0) target = $region9
    $region8: #{tpu_custom_call.1} parent=1 // pred_region
      %24 = vsyncadd [#allocation6], 0
      %s26 = sshll.u32 %s1, 4
      %s27 = int_to_ptr.hbm [resolvable:$true] %s26
      %s28 = sshll.u32 [#allocation5], 4
      %s29 = int_to_ptr.vmem [resolvable:$true] %s28
      %31 = dma.hbm_to_vmem [thread:$0]  %s27, 32, %s29, [#allocation6]
    $region9: #{tpu_custom_call.1} parent=1 // pred_fallthru
      _
    // Predicated region
    $region10: #{tpu_custom_call.1} parent=1 // pred_check
      _
    $region11: #{tpu_custom_call.1} parent=1 // pred_check_branch
      %33 = sbr.rel (0) target = $region13
    $region12: #{tpu_custom_call.1} parent=1 // pred_region
      %35 = dma.done [#allocation3], 64
    $region13: #{tpu_custom_call.1} parent=1 // pred_fallthru
      _
    // Predicated region
    $region14: #{tpu_custom_call.1} parent=1 // pred_check
      _
    $region15: #{tpu_custom_call.1} parent=1 // pred_check_branch
      %37 = sbr.rel (0) target = $region17
    $region16: #{tpu_custom_call.1} parent=1 // pred_region
      %39 = dma.done [#allocation6], 32
    $region17: #{tpu_custom_call.1} parent=1 // pred_fallthru
      _
    %v40 = vld [vmem:[#allocation2] sm:$0xf]
    %v41 = vld [vmem:[#allocation5] sm:$0x3]
    %v43 = vperm.slane %v41, 0
    %v44 = vperm.slane %v41, 1
    %v45 = vrot.slane %v44, 6
    %vm46 = vcmask 1041408
    %v47 = vsel %vm46, %v43, %v45
    %v49 = vadd.f32 %v40, %v47
    %50 = vst [vmem:[#allocation7] sm:$0xf] %v49
    // Predicated region
    $region18: #{tpu_custom_call.1} parent=1 // pred_check
      _
    $region19: #{tpu_custom_call.1} parent=1 // pred_check_branch
      %52 = sbr.rel (0) target = $region21
    $region20: #{tpu_custom_call.1} parent=1 // pred_region
      %54 = vsyncadd [#allocation4], 0
      %s56 = sshll.u32 [#allocation7], 4
      %s57 = int_to_ptr.vmem [resolvable:$true] %s56
      %s58 = sshll.u32 %s2, 4
      %s59 = int_to_ptr.hbm [resolvable:$true] %s58
      %61 = dma.vmem_to_hbm [thread:$0]  %s57, 64, %s59, [#allocation4]
    $region21: #{tpu_custom_call.1} parent=1 // pred_fallthru
      _
    // Predicated region
    $region22: #{tpu_custom_call.1} parent=1 // pred_check
      _
    $region23: #{tpu_custom_call.1} parent=1 // pred_check_branch
      %63 = sbr.rel (0) target = $region25
    $region24: #{tpu_custom_call.1} parent=1 // pred_region
      %65 = dma.done [#allocation4], 64
    $region25: #{tpu_custom_call.1} parent=1 // pred_fallthru
      _
    %66 = vsyncpa [#allocation3], 1
    %67 = vsyncpa [#allocation6], 1
    %68 = vsyncpa [#allocation4], 1

</llo_original>
